<compile_context>
chip_gen: v6e
topology: v6e:2x2x1
jax: 0.10.0
libtpu: 0.0.40
codegen_flags: <defaults>
</compile_context>

<pallas_src>
import functools

import jax
import jax.numpy as jnp
from jax.experimental import pallas as pl
from jax.experimental.pallas import tpu as pltpu


def _cdiv(a, b):
    return (a + b - 1) // b


def _round_up(x, m):
    return ((x + m - 1) // m) * m


def _ce_kernel(logits_ref, target_ref, out_ref, m_sc, l_sc, tl_sc, *, c, tc):
    """One (row-tile, class-tile) step of cross entropy with online logsumexp.

    logits_ref : (TN, TC)  input dtype (upcast to f32 here)
    target_ref : (TN, 1)   int32 class indices
    out_ref    : (TN, 1)   f32 per-row loss (written on the last class tile)
    m_sc/l_sc/tl_sc : (TN, 1) f32 scratch (running max / running sum / target logit)
    c, tc      : static total class count and class-tile size
    """
    j = pl.program_id(1)          # class-tile index (innermost, "arbitrary")
    nj = pl.num_programs(1)

    @pl.when(j == 0)
    def _init():
        m_sc[...] = jnp.full_like(m_sc, -jnp.inf)
        l_sc[...] = jnp.zeros_like(l_sc)
        tl_sc[...] = jnp.zeros_like(tl_sc)

    x = logits_ref[...].astype(jnp.float32)              # (TN, TC) f32
    tn_, tc_ = x.shape

    # Target gather: shift the target by -j*tc (a (TN,1) op) and compare against
    # a plain lane iota -> saves a full-tile (TN,TC) add per class tile.
    tgt_local = target_ref[...] - j * tc                 # (TN, 1) int32
    col = jax.lax.broadcasted_iota(jnp.int32, (tn_, tc_), 1)
    is_tgt_f = (col == tgt_local).astype(jnp.float32)    # (TN, TC)

    def _update(xv):
        # Fused target-logit gather (single mul feeding a lane reduce).  xv is
        # finite at every non-target position in both paths, so mul-by-zero is
        # safe (no NaN*0).
        tl_sc[...] += jnp.sum(xv * is_tgt_f, axis=-1, keepdims=True)
        # Online (flash-style) logsumexp over the class axis.
        m_prev = m_sc[...]
        m_new = jnp.maximum(m_prev, jnp.max(xv, axis=-1, keepdims=True))
        alpha = jnp.exp(m_prev - m_new)
        l_sc[...] = alpha * l_sc[...] + jnp.sum(jnp.exp(xv - m_new),
                                                axis=-1, keepdims=True)
        m_sc[...] = m_new

    ragged_c = (c % tc) != 0      # static: does the last class tile hang over C?
    if ragged_c:
        valid_cols = c % tc       # static number of real columns in last tile
        last = j == nj - 1

        @pl.when(jnp.logical_not(last))
        def _full_tile():
            _update(x)

        @pl.when(last)
        def _edge_tile():
            # Mask out-of-range columns; only the last class tile pays for this.
            _update(jnp.where(col < valid_cols, x, -1e30))
    else:
        _update(x)

    @pl.when(j == nj - 1)
    def _finalize():
        lse = m_sc[...] + jnp.log(l_sc[...])
        out_ref[...] = (lse - tl_sc[...]).astype(out_ref.dtype)


def cross_entropy(logits, target, *, tn=512, tc=None):
    """logits: (N, C) float (f32 or bf16), target: (N,) int class indices -> scalar f32."""
    n, c = logits.shape

    # Row tile: 16-aligned (bf16-friendly) and small enough that there are at
    # least 2 row tiles when N allows it -> both v7x TensorCores get work on the
    # "parallel" row axis (v5e/v6e are single-TC, costs nothing there).
    tn = _round_up(max(16, min(tn, _cdiv(n, 2))), 16)

    # Class tile: target ~8 MiB per logits block (16 MiB double-buffered), i.e.
    # tc=4096 for f32 / tc=8192 for bf16 at tn=512.  Safe on v5e/v6e (128 MiB
    # VMEM) and within the v7x (64 MiB VMEM) budget.
    itemsize = jnp.dtype(logits.dtype).itemsize
    if tc is None:
        tc = max(128, ((8 * 1024 * 1024) // (tn * itemsize)) // 128 * 128)
    tc = _round_up(min(tc, _round_up(c, 128)), 128)

    grid = (_cdiv(n, tn), _cdiv(c, tc))

    # Targets are tiny; just make them 2-D int32 for a (tn, 1) VMEM block.
    target2d = target.astype(jnp.int32).reshape(n, 1)

    kernel = functools.partial(_ce_kernel, c=c, tc=tc)

    per_row = pl.pallas_call(
        kernel,
        out_shape=jax.ShapeDtypeStruct((n, 1), jnp.float32),
        grid_spec=pltpu.PrefetchScalarGridSpec(
            num_scalar_prefetch=0,
            grid=grid,
            in_specs=[
                pl.BlockSpec((tn, tc), lambda i, j: (i, j)),   # logits tile
                pl.BlockSpec((tn, 1), lambda i, j: (i, 0)),    # target tile
            ],
            out_specs=pl.BlockSpec((tn, 1), lambda i, j: (i, 0)),
            scratch_shapes=[
                pltpu.VMEM((tn, 1), jnp.float32),   # running max
                pltpu.VMEM((tn, 1), jnp.float32),   # running sum of exp
                pltpu.VMEM((tn, 1), jnp.float32),   # target logit accumulator
            ],
        ),
        compiler_params=pltpu.CompilerParams(
            dimension_semantics=("parallel", "arbitrary"),
            vmem_limit_bytes=40 * 1024 * 1024,
        ),
    )(logits, target2d)

    # All n output rows are computed from in-bounds data (Pallas masks the
    # ragged edge block's OOB rows), so a plain mean is the true N-divisor mean.
    return jnp.sum(per_row) / n


def _ref_ce(logits, target):
    lg = logits.astype(jnp.float32)
    lse = jax.nn.logsumexp(lg, axis=-1)
    tl = jnp.take_along_axis(lg, target[:, None].astype(jnp.int32), axis=-1)[:, 0]
    return jnp.mean(lse - tl)


if __name__ == "__main__":
    key = jax.random.PRNGKey(0)
    k1, k2, k3, k4 = jax.random.split(key, 4)

    # 1) Small case (single ragged tile on both axes).
    N, C = 8, 32
    logits = jax.random.normal(k1, (N, C), dtype=jnp.float32)
    target = jax.random.randint(k2, (N,), 0, C, dtype=jnp.int32)
    loss = cross_entropy(logits, target)
    jax.block_until_ready(loss)
    assert jnp.allclose(loss, _ref_ce(logits, target), atol=1e-5, rtol=1e-5), (
        loss, _ref_ce(logits, target))

    # 2) Multi-tile case with ragged edges on both axes (exercises the online
    #    LSE across class tiles, the in-kernel column mask and the ragged rows).
    N2, C2 = 200, 300
    logits2 = jax.random.normal(k3, (N2, C2), dtype=jnp.float32) * 3.0
    target2 = jax.random.randint(k4, (N2,), 0, C2, dtype=jnp.int32)
    loss2 = cross_entropy(logits2, target2, tn=64, tc=128)
    jax.block_until_ready(loss2)
    assert jnp.allclose(loss2, _ref_ce(logits2, target2), atol=1e-5, rtol=1e-5), (
        loss2, _ref_ce(logits2, target2))

    # 3) bf16 input path (halves HBM traffic; math stays f32 inside the kernel).
    logits3 = logits2.astype(jnp.bfloat16)
    loss3 = cross_entropy(logits3, target2, tn=64, tc=128)
    jax.block_until_ready(loss3)
    assert jnp.allclose(loss3, _ref_ce(logits3, target2), atol=1e-4, rtol=1e-4), (
        loss3, _ref_ce(logits3, target2))

    # 4) Default (dtype-aware) tiles with a vocab-sized class axis and ragged N.
    N4, C4 = 600, 5000
    logits4 = (jax.random.normal(k1, (N4, C4), dtype=jnp.bfloat16) * 2.0)
    target4 = jax.random.randint(k2, (N4,), 0, C4, dtype=jnp.int32)
    loss4 = cross_entropy(logits4, target4)
    jax.block_until_ready(loss4)
    assert jnp.allclose(loss4, _ref_ce(logits4, target4), atol=1e-4, rtol=1e-4), (
        loss4, _ref_ce(logits4, target4))

    print("KERNEL_OK")
</pallas_src>

<mosaic_0001>
module attributes {stable_mosaic.version = 11 : i64} {
  func.func @_ce_kernel(%arg0: i32, %arg1: i32, %arg2: memref<16x128xf32, #tpu.memory_space<vmem>>, %arg3: memref<16x1xi32, #tpu.memory_space<vmem>>, %arg4: memref<16x1xf32, #tpu.memory_space<vmem>>, %arg5: memref<16x1xf32, #tpu.memory_space<vmem>>, %arg6: memref<16x1xf32, #tpu.memory_space<vmem>>, %arg7: memref<16x1xf32, #tpu.memory_space<vmem>>) attributes {dimension_semantics = [#tpu.dimension_semantics<parallel>, #tpu.dimension_semantics<arbitrary>], iteration_bounds = array<i64: 1, 1>, scalar_prefetch = 0 : i64, scratch_operands = 3 : i64, tpu.core_type = #tpu.core_type<tc>, window_params = [{transform_indices = @transform_0, window_bounds = array<i64: 16, 128>}, {transform_indices = @transform_1, window_bounds = array<i64: 16, 1>}, {transform_indices = @transform_2, window_bounds = array<i64: 16, 1>}]} {
    %c0_i32 = arith.constant 0 : i32
    %0 = arith.cmpi eq, %arg1, %c0_i32 : i32
    %1 = arith.extui %0 : i1 to i32
    %c0_i32_0 = arith.constant 0 : i32
    %2 = arith.cmpi ne, %1, %c0_i32_0 : i32
    scf.if %2 {
      %cst = arith.constant 0xFF800000 : f32
      %22 = vector.broadcast %cst : f32 to vector<16x1xf32>
      %c0_9 = arith.constant 0 : index
      %c0_10 = arith.constant 0 : index
      %23 = vector.load %arg5[%c0_9, %c0_10] : memref<16x1xf32, #tpu.memory_space<vmem>>, vector<16x1xf32>
      tpu.vector_store %arg5[%c0_9, %c0_10], %22 {strides = array<i32>} : memref<16x1xf32, #tpu.memory_space<vmem>>, vector<16x1xf32>,
      %cst_11 = arith.constant 0.000000e+00 : f32
      %24 = vector.broadcast %cst_11 : f32 to vector<16x1xf32>
      %c0_12 = arith.constant 0 : index
      %c0_13 = arith.constant 0 : index
      %25 = vector.load %arg6[%c0_12, %c0_13] : memref<16x1xf32, #tpu.memory_space<vmem>>, vector<16x1xf32>
      tpu.vector_store %arg6[%c0_12, %c0_13], %24 {strides = array<i32>} : memref<16x1xf32, #tpu.memory_space<vmem>>, vector<16x1xf32>,
      %cst_14 = arith.constant 0.000000e+00 : f32
      %26 = vector.broadcast %cst_14 : f32 to vector<16x1xf32>
      %c0_15 = arith.constant 0 : index
      %c0_16 = arith.constant 0 : index
      %27 = vector.load %arg7[%c0_15, %c0_16] : memref<16x1xf32, #tpu.memory_space<vmem>>, vector<16x1xf32>
      tpu.vector_store %arg7[%c0_15, %c0_16], %26 {strides = array<i32>} : memref<16x1xf32, #tpu.memory_space<vmem>>, vector<16x1xf32>,
    } else {
    }
    %c0 = arith.constant 0 : index
    %c0_1 = arith.constant 0 : index
    %3 = vector.load %arg2[%c0, %c0_1] : memref<16x128xf32, #tpu.memory_space<vmem>>, vector<16x128xf32>
    %c0_2 = arith.constant 0 : index
    %c0_3 = arith.constant 0 : index
    %4 = vector.load %arg3[%c0_2, %c0_3] : memref<16x1xi32, #tpu.memory_space<vmem>>, vector<16x1xi32>
    %c128_i32 = arith.constant 128 : i32
    %5 = arith.muli %arg1, %c128_i32 : i32
    %6 = vector.broadcast %5 : i32 to vector<16x1xi32>
    %7 = arith.subi %4, %6 : vector<16x1xi32>
    %8 = tpu.iota {dimensions = array<i32: 1>} : vector<16x128xi32>
    %9 = vector.broadcast %7 : vector<16x1xi32> to vector<16x128xi32>
    %10 = arith.cmpi eq, %8, %9 : vector<16x128xi32>
    %11 = arith.extui %10 : vector<16x128xi1> to vector<16x128xi32>
    %12 = arith.sitofp %11 : vector<16x128xi32> to vector<16x128xf32>
    %c0_i32_4 = arith.constant 0 : i32
    %13 = arith.cmpi eq, %arg1, %c0_i32_4 : i32
    %true = arith.constant true
    %14 = arith.xori %13, %true : i1
    %15 = arith.extui %14 : i1 to i32
    %c0_i32_5 = arith.constant 0 : i32
    %16 = arith.cmpi ne, %15, %c0_i32_5 : i32
    scf.if %16 {
      %c0_9 = arith.constant 0 : index
      %c0_10 = arith.constant 0 : index
      %22 = vector.load %arg7[%c0_9, %c0_10] : memref<16x1xf32, #tpu.memory_space<vmem>>, vector<16x1xf32>
      %23 = arith.mulf %3, %12 : vector<16x128xf32>
      %cst = arith.constant dense<0.000000e+00> : vector<16xf32>
      %24 = vector.multi_reduction <add>, %23, %cst [1] : vector<16x128xf32> to vector<16xf32>
      %25 = vector.shape_cast %24 : vector<16xf32> to vector<16x1xf32>
      %26 = arith.addf %22, %25 : vector<16x1xf32>
      %c0_11 = arith.constant 0 : index
      %c0_12 = arith.constant 0 : index
      %27 = vector.load %arg7[%c0_11, %c0_12] : memref<16x1xf32, #tpu.memory_space<vmem>>, vector<16x1xf32>
      tpu.vector_store %arg7[%c0_11, %c0_12], %26 {strides = array<i32>} : memref<16x1xf32, #tpu.memory_space<vmem>>, vector<16x1xf32>,
      %c0_13 = arith.constant 0 : index
      %c0_14 = arith.constant 0 : index
      %28 = vector.load %arg5[%c0_13, %c0_14] : memref<16x1xf32, #tpu.memory_space<vmem>>, vector<16x1xf32>
      %cst_15 = arith.constant dense<0xFF800000> : vector<16xf32>
      %29 = vector.multi_reduction <maximumf>, %3, %cst_15 [1] : vector<16x128xf32> to vector<16xf32>
      %30 = vector.shape_cast %29 : vector<16xf32> to vector<16x1xf32>
      %31 = arith.maximumf %28, %30 : vector<16x1xf32>
      %32 = arith.subf %28, %31 : vector<16x1xf32>
      %33 = math.exp %32 : vector<16x1xf32>
      %c0_16 = arith.constant 0 : index
      %c0_17 = arith.constant 0 : index
      %34 = vector.load %arg6[%c0_16, %c0_17] : memref<16x1xf32, #tpu.memory_space<vmem>>, vector<16x1xf32>
      %35 = arith.mulf %33, %34 : vector<16x1xf32>
      %36 = vector.broadcast %31 : vector<16x1xf32> to vector<16x128xf32>
      %37 = arith.subf %3, %36 : vector<16x128xf32>
      %38 = math.exp %37 : vector<16x128xf32>
      %cst_18 = arith.constant dense<0.000000e+00> : vector<16xf32>
      %39 = vector.multi_reduction <add>, %38, %cst_18 [1] : vector<16x128xf32> to vector<16xf32>
      %40 = vector.shape_cast %39 : vector<16xf32> to vector<16x1xf32>
      %41 = arith.addf %35, %40 : vector<16x1xf32>
      %c0_19 = arith.constant 0 : index
      %c0_20 = arith.constant 0 : index
      %42 = vector.load %arg6[%c0_19, %c0_20] : memref<16x1xf32, #tpu.memory_space<vmem>>, vector<16x1xf32>
      tpu.vector_store %arg6[%c0_19, %c0_20], %41 {strides = array<i32>} : memref<16x1xf32, #tpu.memory_space<vmem>>, vector<16x1xf32>,
      %c0_21 = arith.constant 0 : index
      %c0_22 = arith.constant 0 : index
      %43 = vector.load %arg5[%c0_21, %c0_22] : memref<16x1xf32, #tpu.memory_space<vmem>>, vector<16x1xf32>
      tpu.vector_store %arg5[%c0_21, %c0_22], %31 {strides = array<i32>} : memref<16x1xf32, #tpu.memory_space<vmem>>, vector<16x1xf32>,
    } else {
    }
    %17 = arith.extui %13 : i1 to i32
    %c0_i32_6 = arith.constant 0 : i32
    %18 = arith.cmpi ne, %17, %c0_i32_6 : i32
    scf.if %18 {
      %c32_i32 = arith.constant 32 : i32
      %22 = vector.broadcast %c32_i32 : i32 to vector<16x128xi32>
      %23 = arith.cmpi slt, %8, %22 : vector<16x128xi32>
      %cst = arith.constant -1.000000e+30 : f32
      %24 = vector.broadcast %cst : f32 to vector<16x128xf32>
      %25 = arith.select %23, %3, %24 : vector<16x128xi1>, vector<16x128xf32>
      %c0_9 = arith.constant 0 : index
      %c0_10 = arith.constant 0 : index
      %26 = vector.load %arg7[%c0_9, %c0_10] : memref<16x1xf32, #tpu.memory_space<vmem>>, vector<16x1xf32>
      %27 = arith.mulf %25, %12 : vector<16x128xf32>
      %cst_11 = arith.constant dense<0.000000e+00> : vector<16xf32>
      %28 = vector.multi_reduction <add>, %27, %cst_11 [1] : vector<16x128xf32> to vector<16xf32>
      %29 = vector.shape_cast %28 : vector<16xf32> to vector<16x1xf32>
      %30 = arith.addf %26, %29 : vector<16x1xf32>
      %c0_12 = arith.constant 0 : index
      %c0_13 = arith.constant 0 : index
      %31 = vector.load %arg7[%c0_12, %c0_13] : memref<16x1xf32, #tpu.memory_space<vmem>>, vector<16x1xf32>
      tpu.vector_store %arg7[%c0_12, %c0_13], %30 {strides = array<i32>} : memref<16x1xf32, #tpu.memory_space<vmem>>, vector<16x1xf32>,
      %c0_14 = arith.constant 0 : index
      %c0_15 = arith.constant 0 : index
      %32 = vector.load %arg5[%c0_14, %c0_15] : memref<16x1xf32, #tpu.memory_space<vmem>>, vector<16x1xf32>
      %cst_16 = arith.constant dense<0xFF800000> : vector<16xf32>
      %33 = vector.multi_reduction <maximumf>, %25, %cst_16 [1] : vector<16x128xf32> to vector<16xf32>
      %34 = vector.shape_cast %33 : vector<16xf32> to vector<16x1xf32>
      %35 = arith.maximumf %32, %34 : vector<16x1xf32>
      %36 = arith.subf %32, %35 : vector<16x1xf32>
      %37 = math.exp %36 : vector<16x1xf32>
      %c0_17 = arith.constant 0 : index
      %c0_18 = arith.constant 0 : index
      %38 = vector.load %arg6[%c0_17, %c0_18] : memref<16x1xf32, #tpu.memory_space<vmem>>, vector<16x1xf32>
      %39 = arith.mulf %37, %38 : vector<16x1xf32>
      %40 = vector.broadcast %35 : vector<16x1xf32> to vector<16x128xf32>
      %41 = arith.subf %25, %40 : vector<16x128xf32>
      %42 = math.exp %41 : vector<16x128xf32>
      %cst_19 = arith.constant dense<0.000000e+00> : vector<16xf32>
      %43 = vector.multi_reduction <add>, %42, %cst_19 [1] : vector<16x128xf32> to vector<16xf32>
      %44 = vector.shape_cast %43 : vector<16xf32> to vector<16x1xf32>
      %45 = arith.addf %39, %44 : vector<16x1xf32>
      %c0_20 = arith.constant 0 : index
      %c0_21 = arith.constant 0 : index
      %46 = vector.load %arg6[%c0_20, %c0_21] : memref<16x1xf32, #tpu.memory_space<vmem>>, vector<16x1xf32>
      tpu.vector_store %arg6[%c0_20, %c0_21], %45 {strides = array<i32>} : memref<16x1xf32, #tpu.memory_space<vmem>>, vector<16x1xf32>,
      %c0_22 = arith.constant 0 : index
      %c0_23 = arith.constant 0 : index
      %47 = vector.load %arg5[%c0_22, %c0_23] : memref<16x1xf32, #tpu.memory_space<vmem>>, vector<16x1xf32>
      tpu.vector_store %arg5[%c0_22, %c0_23], %35 {strides = array<i32>} : memref<16x1xf32, #tpu.memory_space<vmem>>, vector<16x1xf32>,
    } else {
    }
    %c0_i32_7 = arith.constant 0 : i32
    %19 = arith.cmpi eq, %arg1, %c0_i32_7 : i32
    %20 = arith.extui %19 : i1 to i32
    %c0_i32_8 = arith.constant 0 : i32
    %21 = arith.cmpi ne, %20, %c0_i32_8 : i32
    scf.if %21 {
      %c0_9 = arith.constant 0 : index
      %c0_10 = arith.constant 0 : index
      %22 = vector.load %arg5[%c0_9, %c0_10] : memref<16x1xf32, #tpu.memory_space<vmem>>, vector<16x1xf32>
      %c0_11 = arith.constant 0 : index
      %c0_12 = arith.constant 0 : index
      %23 = vector.load %arg6[%c0_11, %c0_12] : memref<16x1xf32, #tpu.memory_space<vmem>>, vector<16x1xf32>
      %24 = math.log %23 : vector<16x1xf32>
      %25 = arith.addf %22, %24 : vector<16x1xf32>
      %c0_13 = arith.constant 0 : index
      %c0_14 = arith.constant 0 : index
      %26 = vector.load %arg7[%c0_13, %c0_14] : memref<16x1xf32, #tpu.memory_space<vmem>>, vector<16x1xf32>
      %27 = arith.subf %25, %26 : vector<16x1xf32>
      %c0_15 = arith.constant 0 : index
      %c0_16 = arith.constant 0 : index
      %28 = vector.load %arg4[%c0_15, %c0_16] : memref<16x1xf32, #tpu.memory_space<vmem>>, vector<16x1xf32>
      tpu.vector_store %arg4[%c0_15, %c0_16], %27 {strides = array<i32>} : memref<16x1xf32, #tpu.memory_space<vmem>>, vector<16x1xf32>,
    } else {
    }
    return
  }
  func.func @transform_0(%arg0: i32, %arg1: i32) -> (i32, i32) {
    %c0_i32 = arith.constant 0 : i32
    return %arg0, %arg1 : i32, i32
  }
  func.func @transform_1(%arg0: i32, %arg1: i32) -> (i32, i32) {
    %c0_i32 = arith.constant 0 : i32
    %c0_i32_0 = arith.constant 0 : i32
    return %arg0, %c0_i32 : i32, i32
  }
  func.func @transform_2(%arg0: i32, %arg1: i32) -> (i32, i32) {
    %c0_i32 = arith.constant 0 : i32
    %c0_i32_0 = arith.constant 0 : i32
    return %arg0, %c0_i32 : i32, i32
  }
}

</mosaic_0001>

<llo_original>
// kernel: tpu_custom_call.1
$region0: #{tpu_custom_call.1}
  #allocation0 [shape = 'u32[]', space=smem, size = 0x4, offset = 0x4, fixed_abs, tag = 'smem constant byte address 0x4 - core index']
  #allocation1 [shape = 'u32[144,128]{1,0:T(1,128)}', space=vmem, size = 0x12000, scoped, tag = 'internal scratch']
  #allocation2 [shape = 'f32[16,1]{1,0:T(8,128)}', space=vmem, size = 0x2000, scoped, tag = 'scratch operand']
  #allocation3 [shape = 'f32[16,1]{1,0:T(8,128)}', space=vmem, size = 0x2000, scoped, tag = 'scratch operand']
  #allocation4 [shape = 'f32[16,1]{1,0:T(8,128)}', space=vmem, size = 0x2000, scoped, tag = 'scratch operand']
  %s0 = inlined_call_operand.vmem [shape: f32[8,32], index: 0, kind: input, shape index: {}]
  %s1 = inlined_call_operand.vmem [shape: s32[8,1], index: 1, kind: input, shape index: {}]
  %s2 = inlined_call_operand.vmem [shape: f32[8,1], index: 2, kind: output, shape index: {}]
  %s3 = sld [smem:[#allocation0]]
  $region64: #{tpu_custom_call.1} parent=0
    _
  %s5 = ssub.s32 1, %s3
  %s6 = scalar_select 0, %s5, %s3
  $region1: #{tpu_custom_call.1} parent=0
    #allocation5 [shape = 'u8[8192]{0}', space=vmem, size = 0x2000, scoped, tag = 'output window, operand 0, single buffered']
    // Predicated region
    $region2: #{tpu_custom_call.1} parent=1 // pred_check
      _
    $region3: #{tpu_custom_call.1} parent=1 // pred_check_branch
      %8 = sbr.rel (0) target = $region5
    $region4: #{tpu_custom_call.1} parent=1 // pred_region
      _
    $region5: #{tpu_custom_call.1} parent=1 // pred_fallthru
      _
    // Predicated region
    $region6: #{tpu_custom_call.1} parent=1 // pred_check
      _
    $region7: #{tpu_custom_call.1} parent=1 // pred_check_branch
      %10 = sbr.rel (0) target = $region9
    $region8: #{tpu_custom_call.1} parent=1 // pred_region
      _
    $region9: #{tpu_custom_call.1} parent=1 // pred_fallthru
      _
    %p11 = scmp.eq.s32.totalorder 0, 0
    // Predicated region
    $region10: #{tpu_custom_call.1} parent=1 // pred_check
      %p12 = pneg %p11
    $region11: #{tpu_custom_call.1} parent=1 // pred_check_branch
      %14 = sbr.rel (%p12) target = $region13
    $region12: #{tpu_custom_call.1} parent=1 // pred_region
      %vm15 = vcmask 7168
      %16 = vst.msk [vmem:[#allocation2] sm:$0xff] %vm15, -inf
      %17 = vst.msk [vmem:[#allocation2 + $0x8] sm:$0xff] %vm15, -inf
      %18 = vst.msk [vmem:[#allocation3] sm:$0xff] %vm15, 0.0
      %19 = vst.msk [vmem:[#allocation3 + $0x8] sm:$0xff] %vm15, 0.0
      %20 = vst.msk [vmem:[#allocation4] sm:$0xff] %vm15, 0.0
      %21 = vst.msk [vmem:[#allocation4 + $0x8] sm:$0xff] %vm15, 0.0
    $region13: #{tpu_custom_call.1} parent=1 // pred_fallthru
      _
    %v22 = vld [vmem:[%s0] sm:$0xff]
    %v23 = vld [vmem:[%s0 + $0x8] sm:$0xff]
    %v24 = vld [vmem:[%s1] sm:$0xff]
    %v25 = vld [vmem:[%s1 + $0x8] sm:$0xff]
    %s26 = smul.u32 0, 128
    %v27 = vstv %s26
    %v28 = vsub.s32 %v24, %v27
    %v29 = vsub.s32 %v25, %v27
    %v30 = vlaneseq
    %v31 = vand.u32 %v30, 127
    %32 = vset.pattern.permute.xlu0 0
    %33 = vperm.xlu0 %32, %v28
    %v34 = vpop.permute.xlu0 %33
    %35 = vset.pattern.permute.xlu0 0
    %36 = vperm.xlu0 %35, %v29
    %v37 = vpop.permute.xlu0 %36
    %vm38 = vcmp.eq.s32.totalorder %v31, %v34
    %vm39 = vcmp.eq.s32.totalorder %v31, %v37
    %v40 = vsel %vm38, 1, 0
    %v41 = vsel %vm39, 1, 0
    %v42 = vcvt.s32.f32 %v40
    %v43 = vcvt.s32.f32 %v41
    %p44 = scmp.ne.s32.totalorder 0, 0
    // Predicated region
    $region14: #{tpu_custom_call.1} parent=1 // pred_check
      %p45 = pneg %p44
    $region15: #{tpu_custom_call.1} parent=1 // pred_check_branch
      %47 = sbr.rel (%p45) target = $region17
    $region16: #{tpu_custom_call.1} parent=1 // pred_region
      %v48 = vld [vmem:[#allocation4] sm:$0xff]
      %v49 = vld [vmem:[#allocation4 + $0x8] sm:$0xff]
      %v50 = vmul.f32 %v22, %v42
      %v51 = vmul.f32 %v23, %v43
      %52 = vadd.xlane.f32.xlu0 %v50
      %v53 = vpop.xlane.xlu0 %52
      %54 = vadd.xlane.f32.xlu0 %v51
      %v55 = vpop.xlane.xlu0 %54
      %v56 = vadd.f32 %v48, %v53
      %v57 = vadd.f32 %v49, %v55
      %vm58 = vcmask 7168
      %59 = vst.msk [vmem:[#allocation4] sm:$0xff] %vm58, %v56
      %60 = vst.msk [vmem:[#allocation4 + $0x8] sm:$0xff] %vm58, %v57
      %v61 = vld [vmem:[#allocation2] sm:$0xff]
      %v62 = vld [vmem:[#allocation2 + $0x8] sm:$0xff]
      %63 = vmax.xlane.f32.xlu0 %v22
      %v64 = vpop.xlane.xlu0 %63
      %65 = vmax.xlane.f32.xlu0 %v23
      %v66 = vpop.xlane.xlu0 %65
      %v67 = vmax.f32 %v61, %v64
      %v68 = vmax.f32 %v62, %v66
      %v69 = vsub.f32 %v61, %v67
      %v70 = vsub.f32 %v62, %v68
      %v71 = vmul.f32 %v69, 1.442695
      %v72 = vpow.pop %v71
      %v73 = vmul.f32 %v70, 1.442695
      %v74 = vpow.pop %v73
      %v75 = vld [vmem:[#allocation3] sm:$0xff]
      %v76 = vld [vmem:[#allocation3 + $0x8] sm:$0xff]
      %v77 = vmul.f32 %v72, %v75
      %v78 = vmul.f32 %v74, %v76
      %80 = vset.pattern.permute.xlu0 0
      %81 = vperm.xlu0 %80, %v67
      %v82 = vpop.permute.xlu0 %81
      %85 = vset.pattern.permute.xlu0 0
      %86 = vperm.xlu0 %85, %v68
      %v87 = vpop.permute.xlu0 %86
      %v89 = vsub.f32 %v22, %v82
      %v90 = vsub.f32 %v23, %v87
      %v91 = vmul.f32 %v89, 1.442695
      %v92 = vpow.pop %v91
      %v93 = vmul.f32 %v90, 1.442695
      %v94 = vpow.pop %v93
      %95 = vadd.xlane.f32.xlu0 %v92
      %v96 = vpop.xlane.xlu0 %95
      %97 = vadd.xlane.f32.xlu0 %v94
      %v98 = vpop.xlane.xlu0 %97
      %v99 = vadd.f32 %v77, %v96
      %v100 = vadd.f32 %v78, %v98
      %101 = vst.msk [vmem:[#allocation3] sm:$0xff] %vm58, %v99
      %102 = vst.msk [vmem:[#allocation3 + $0x8] sm:$0xff] %vm58, %v100
      %103 = vst.msk [vmem:[#allocation2] sm:$0xff] %vm58, %v67
      %104 = vst.msk [vmem:[#allocation2 + $0x8] sm:$0xff] %vm58, %v68
    $region17: #{tpu_custom_call.1} parent=1 // pred_fallthru
      _
    // Predicated region
    $region18: #{tpu_custom_call.1} parent=1 // pred_check
      %p105 = pneg %p11
    $region19: #{tpu_custom_call.1} parent=1 // pred_check_branch
      %107 = sbr.rel (%p105) target = $region21
    $region20: #{tpu_custom_call.1} parent=1 // pred_region
      %vm108 = vcmp.lt.s32.totalorder %v31, 32
      %v109 = vsel %vm108, %v22, -1e+30
      %v110 = vsel %vm108, %v23, -1e+30
      %v111 = vld [vmem:[#allocation4] sm:$0xff]
      %v112 = vld [vmem:[#allocation4 + $0x8] sm:$0xff]
      %v113 = vmul.f32 %v109, %v42
      %v114 = vmul.f32 %v110, %v43
      %115 = vadd.xlane.f32.xlu0 %v113
      %v116 = vpop.xlane.xlu0 %115
      %117 = vadd.xlane.f32.xlu0 %v114
      %v118 = vpop.xlane.xlu0 %117
      %v119 = vadd.f32 %v111, %v116
      %v120 = vadd.f32 %v112, %v118
      %vm121 = vcmask 7168
      %122 = vst.msk [vmem:[#allocation4] sm:$0xff] %vm121, %v119
      %123 = vst.msk [vmem:[#allocation4 + $0x8] sm:$0xff] %vm121, %v120
      %v124 = vld [vmem:[#allocation2] sm:$0xff]
      %v125 = vld [vmem:[#allocation2 + $0x8] sm:$0xff]
      %126 = vmax.xlane.f32.xlu0 %v109
      %v127 = vpop.xlane.xlu0 %126
      %128 = vmax.xlane.f32.xlu0 %v110
      %v129 = vpop.xlane.xlu0 %128
      %v130 = vmax.f32 %v124, %v127
      %v131 = vmax.f32 %v125, %v129
      %v132 = vsub.f32 %v124, %v130
      %v133 = vsub.f32 %v125, %v131
      %v134 = vmul.f32 %v132, 1.442695
      %v135 = vpow.pop %v134
      %v136 = vmul.f32 %v133, 1.442695
      %v137 = vpow.pop %v136
      %v138 = vld [vmem:[#allocation3] sm:$0xff]
      %v139 = vld [vmem:[#allocation3 + $0x8] sm:$0xff]
      %v140 = vmul.f32 %v135, %v138
      %v141 = vmul.f32 %v137, %v139
      %143 = vset.pattern.permute.xlu0 0
      %144 = vperm.xlu0 %143, %v130
      %v145 = vpop.permute.xlu0 %144
      %148 = vset.pattern.permute.xlu0 0
      %149 = vperm.xlu0 %148, %v131
      %v150 = vpop.permute.xlu0 %149
      %v152 = vsub.f32 %v109, %v145
      %v153 = vsub.f32 %v110, %v150
      %v154 = vmul.f32 %v152, 1.442695
      %v155 = vpow.pop %v154
      %v156 = vmul.f32 %v153, 1.442695
      %v157 = vpow.pop %v156
      %158 = vadd.xlane.f32.xlu0 %v155
      %v159 = vpop.xlane.xlu0 %158
      %160 = vadd.xlane.f32.xlu0 %v157
      %v161 = vpop.xlane.xlu0 %160
      %v162 = vadd.f32 %v140, %v159
      %v163 = vadd.f32 %v141, %v161
      %164 = vst.msk [vmem:[#allocation3] sm:$0xff] %vm121, %v162
      %165 = vst.msk [vmem:[#allocation3 + $0x8] sm:$0xff] %vm121, %v163
      %166 = vst.msk [vmem:[#allocation2] sm:$0xff] %vm121, %v130
      %167 = vst.msk [vmem:[#allocation2 + $0x8] sm:$0xff] %vm121, %v131
      %v168 = vld [vmem:[#allocation2] sm:$0xff]
      %v169 = vld [vmem:[#allocation2 + $0x8] sm:$0xff]
      %v170 = vld [vmem:[#allocation3] sm:$0xff]
      %v171 = vld [vmem:[#allocation3 + $0x8] sm:$0xff]
      %v172 = vlog2.pop %v170
      %v173 = vmul.f32 %v172, 0.6931472
      %v174 = vlog2.pop %v171
      %v175 = vmul.f32 %v174, 0.6931472
      %v176 = vadd.f32 %v168, %v173
      %v177 = vadd.f32 %v169, %v175
      %v178 = vld [vmem:[#allocation4] sm:$0xff]
      %v179 = vld [vmem:[#allocation4 + $0x8] sm:$0xff]
      %v180 = vsub.f32 %v176, %v178
      %v181 = vsub.f32 %v177, %v179
      %182 = vst.msk [vmem:[#allocation5] sm:$0xff] %vm121, %v180
      %183 = vst.msk [vmem:[#allocation5 + $0x8] sm:$0xff] %vm121, %v181
    $region21: #{tpu_custom_call.1} parent=1 // pred_fallthru
      _
    // Predicated region
    $region22: #{tpu_custom_call.1} parent=1 // pred_check
      _
    $region23: #{tpu_custom_call.1} parent=1 // pred_check_branch
      %185 = sbr.rel (0) target = $region25
    $region24: #{tpu_custom_call.1} parent=1 // pred_region
      // Predicated region
      $region26: #{tpu_custom_call.1} parent=24 // pred_check
        _
      $region27: #{tpu_custom_call.1} parent=24 // pred_check_branch
        %187 = sbr.rel (0) target = $region29
      $region28: #{tpu_custom_call.1} parent=24 // pred_region
        // Predicated region
        $region30: #{tpu_custom_call.1} parent=28 // pred_check
          _
        $region31: #{tpu_custom_call.1} parent=28 // pred_check_branch
          %189 = sbr.rel (0) target = $region33
        $region32: #{tpu_custom_call.1} parent=28 // pred_region
          // Predicated region
          $region45: #{tpu_custom_call.1} parent=32 // pred_check
            _
          $region46: #{tpu_custom_call.1} parent=32 // pred_check_branch
            %205 = sbr.rel (0) target = $region48
          $region47: #{tpu_custom_call.1} parent=32 // pred_region
            loop: start=0, step=1, limit=1
            $region49: #{tpu_custom_call.1} parent=47 // loop_pre_header
              _
            $region50: #{tpu_custom_call.1} parent=47 // loop_header
              %s207 = sphi 0, %s211
              %p208 = scmp.ge.s32.totalorder %s207, 1
              %s212 = sphi [#allocation5], [#allocation5]
              %s213 = sphi %s2, %s2
            $region51: #{tpu_custom_call.1} parent=47 // loop_header_branch
              %210 = sbr.rel (%p208) target = $region55
            $region52: #{tpu_custom_call.1} parent=47 // loop_body
              %v214 = vld [vmem:[%s212] sm:$0xff]
              %215 = vst [vmem:[%s213] sm:$0xff] %v214
            $region53: #{tpu_custom_call.1} parent=47 // loop_footer
              %s211 = sadd.s32 1, %s207
            $region54: #{tpu_custom_call.1} parent=47 // loop_footer_branch
              %206 = sbr.rel target = $region50
            $region55: #{tpu_custom_call.1} parent=47 // loop_exit
              _
          $region48: #{tpu_custom_call.1} parent=32 // pred_fallthru
            _
          // Predicated region
          $region56: #{tpu_custom_call.1} parent=32 // pred_check
            _
          $region57: #{tpu_custom_call.1} parent=32 // pred_check_branch
            %217 = sbr.rel target = $region59
          $region58: #{tpu_custom_call.1} parent=32 // pred_region
            _
          $region59: #{tpu_custom_call.1} parent=32 // pred_fallthru
            _
        $region33: #{tpu_custom_call.1} parent=28 // pred_fallthru
          _
        // Predicated region
        $region34: #{tpu_custom_call.1} parent=28 // pred_check
          _
        $region35: #{tpu_custom_call.1} parent=28 // pred_check_branch
          %191 = sbr.rel target = $region37
        $region36: #{tpu_custom_call.1} parent=28 // pred_region
          %s193 = ssub.s32 256, 1
          loop: start=0, step=1, limit=1
          $region38: #{tpu_custom_call.1} parent=36 // loop_pre_header
            _
          $region39: #{tpu_custom_call.1} parent=36 // loop_header
            %s195 = sphi 0, %s199
            %p196 = scmp.ge.s32.totalorder %s195, 1
            %s200 = sphi [#allocation5], [#allocation5]
            %s201 = sphi %s2, %s2
          $region40: #{tpu_custom_call.1} parent=36 // loop_header_branch
            %198 = sbr.rel (%p196) target = $region44
          $region41: #{tpu_custom_call.1} parent=36 // loop_body
            %v202 = vld [vmem:[%s200] sm:%s193]
            %203 = vst [vmem:[%s201] sm:%s193] %v202
          $region42: #{tpu_custom_call.1} parent=36 // loop_footer
            %s199 = sadd.s32 1, %s195
          $region43: #{tpu_custom_call.1} parent=36 // loop_footer_branch
            %194 = sbr.rel target = $region39
          $region44: #{tpu_custom_call.1} parent=36 // loop_exit
            _
        $region37: #{tpu_custom_call.1} parent=28 // pred_fallthru
          _
      $region29: #{tpu_custom_call.1} parent=24 // pred_fallthru
        _
      %218 = vnop
    $region25: #{tpu_custom_call.1} parent=1 // pred_fallthru
      _
    // Predicated region
    $region60: #{tpu_custom_call.1} parent=1 // pred_check
      _
    $region61: #{tpu_custom_call.1} parent=1 // pred_check_branch
      %220 = sbr.rel (0) target = $region63
    $region62: #{tpu_custom_call.1} parent=1 // pred_region
      _
    $region63: #{tpu_custom_call.1} parent=1 // pred_fallthru
      _

</llo_original>
